<compile_context>
chip_gen: v7x
topology: tpu7x:2x2x1
jax: 0.10.0
libtpu: 0.0.40
codegen_flags: <defaults>
</compile_context>

<pallas_src>
import functools

import jax
import jax.numpy as jnp
from jax.experimental import pallas as pl
from jax.experimental.pallas import tpu as pltpu

_EPS = 1e-6


def _round_up(x, m):
    return ((x + m - 1) // m) * m


def _triplet_kernel(anchor_ref, pos_ref, neg_ref, out_ref, *, margin, n_rows, tile_n):
    a = anchor_ref[...].astype(jnp.float32)
    p = pos_ref[...].astype(jnp.float32)
    n = neg_ref[...].astype(jnp.float32)

    # Module forward swaps arguments: Loss(anchor, neg, pos)
    # => "positive" distance uses `neg`, "negative" distance uses `pos`.
    diff_pos = a - n + _EPS
    diff_neg = a - p + _EPS

    d_pos = jnp.sqrt(jnp.sum(diff_pos * diff_pos, axis=-1, keepdims=True))  # (TILE_N, 1)
    d_neg = jnp.sqrt(jnp.sum(diff_neg * diff_neg, axis=-1, keepdims=True))  # (TILE_N, 1)

    hinge = jnp.maximum(d_pos - d_neg + margin, 0.0)                        # (TILE_N, 1)

    # Zero out padded rows of the ragged last tile (padded reads are garbage),
    # so the wrapper can just sum everything and divide by the true N.
    row = pl.program_id(0) * tile_n + jax.lax.broadcasted_iota(
        jnp.int32, hinge.shape, 0)
    out_ref[...] = jnp.where(row < n_rows, hinge, 0.0)


def _pick_tile_n(n, d, itemsize):
    # Sublane alignment: 8 rows for 32-bit, 16 for bf16/f16, 32 for 8-bit.
    align = 8 if itemsize >= 4 else (16 if itemsize == 2 else 32)
    d_pad = _round_up(max(d, 1), 128)  # VMEM lanes are padded to 128
    # 3 inputs x 2 pipeline buffers (input dtype) + ~4 fp32 temporaries per row.
    per_row = 3 * 2 * d_pad * itemsize + 4 * d_pad * 4
    budget = 6 * 1024 * 1024  # comfortably under v5e's 16 MiB scoped default
    tile = min(budget // per_row, 1024)
    tile = max(align, (tile // align) * align)
    return min(tile, _round_up(n, align))


def triplet_loss(anchor, pos, neg, margin=0.5, tile_n=None):
    assert anchor.shape == pos.shape == neg.shape
    assert anchor.ndim == 2, "expected (N, D) inputs"
    N, D = anchor.shape
    itemsize = jnp.dtype(anchor.dtype).itemsize
    align = 8 if itemsize >= 4 else (16 if itemsize == 2 else 32)

    if tile_n is None:
        tile_n = _pick_tile_n(N, D, itemsize)
    tile_n = max(align, (int(tile_n) // align) * align)
    num_tiles = pl.cdiv(N, tile_n)

    # TODO(synk): for D < 128 a lane-dense (D, N)-transposed layout would
    # recover the 4x lane under-utilization; kept (N, D) here for simplicity
    # since the kernel is HBM-bandwidth bound, not VPU bound.

    kernel = functools.partial(
        _triplet_kernel, margin=float(margin), n_rows=N, tile_n=tile_n)

    in_spec = pl.BlockSpec((tile_n, D), lambda i: (i, 0))
    out_spec = pl.BlockSpec((tile_n, 1), lambda i: (i, 0))

    cost = pl.CostEstimate(
        flops=8 * N * D,
        transcendentals=2 * N,
        bytes_accessed=3 * N * D * itemsize + num_tiles * tile_n * 4,
    )

    per_sample = pl.pallas_call(
        kernel,
        out_shape=jax.ShapeDtypeStruct((num_tiles * tile_n, 1), jnp.float32),
        grid=(num_tiles,),
        in_specs=[in_spec, in_spec, in_spec],
        out_specs=out_spec,
        compiler_params=pltpu.CompilerParams(
            dimension_semantics=("parallel",)),
        cost_estimate=cost,
    )(anchor, pos, neg)

    # Padded rows were zeroed in-kernel; divide by the true batch size.
    return jnp.sum(per_sample) / N


def triplet_loss_ref(anchor, pos, neg, margin=0.5):
    # Pure-JAX reference mirroring torch.nn.TripletMarginLoss(margin, p=2)
    # called as Loss(anchor, neg, pos).
    a = anchor.astype(jnp.float32)
    p = pos.astype(jnp.float32)
    n = neg.astype(jnp.float32)
    d_pos = jnp.sqrt(jnp.sum((a - n + _EPS) ** 2, axis=-1))
    d_neg = jnp.sqrt(jnp.sum((a - p + _EPS) ** 2, axis=-1))
    return jnp.mean(jnp.maximum(d_pos - d_neg + margin, 0.0))


if __name__ == "__main__":
    key = jax.random.PRNGKey(0)
    k1, k2, k3, k4 = jax.random.split(key, 4)

    # As the docstring notes, the anchor is "mostly a zero array" of distances.
    N, D = 8, 32
    anchor = jnp.zeros((N, D), jnp.float32)
    pos = jax.random.normal(k1, (N, D), jnp.float32)
    neg = jax.random.normal(k2, (N, D), jnp.float32)

    out = triplet_loss(anchor, pos, neg, margin=0.5)
    jax.block_until_ready(out)
    ref = triplet_loss_ref(anchor, pos, neg, margin=0.5)
    assert jnp.allclose(out, ref, atol=1e-5, rtol=1e-5), (out, ref)

    # Ragged multi-tile case: exercises the grid, pipelining and row masking.
    N2, D2 = 100, 32
    anchor2 = jnp.zeros((N2, D2), jnp.float32)
    pos2 = jax.random.normal(k3, (N2, D2), jnp.float32)
    neg2 = jax.random.normal(k4, (N2, D2), jnp.float32)
    out2 = triplet_loss(anchor2, pos2, neg2, margin=0.5, tile_n=32)
    jax.block_until_ready(out2)
    ref2 = triplet_loss_ref(anchor2, pos2, neg2, margin=0.5)
    assert jnp.allclose(out2, ref2, atol=1e-5, rtol=1e-5), (out2, ref2)

    print("KERNEL_OK")
</pallas_src>

<mosaic_0001>
module attributes {stable_mosaic.version = 11 : i64} {
  func.func @_triplet_kernel(%arg0: i32, %arg1: memref<8x32xf32, #tpu.memory_space<vmem>>, %arg2: memref<8x32xf32, #tpu.memory_space<vmem>>, %arg3: memref<8x32xf32, #tpu.memory_space<vmem>>, %arg4: memref<8x1xf32, #tpu.memory_space<vmem>>) attributes {dimension_semantics = [#tpu.dimension_semantics<parallel>], iteration_bounds = array<i64: 1>, scalar_prefetch = 0 : i64, scratch_operands = 0 : i64, tpu.core_type = #tpu.core_type<tc>, window_params = [{transform_indices = @transform_0, window_bounds = array<i64: 8, 32>}, {transform_indices = @transform_1, window_bounds = array<i64: 8, 32>}, {transform_indices = @transform_2, window_bounds = array<i64: 8, 32>}, {transform_indices = @transform_3, window_bounds = array<i64: 8, 1>}]} {
    %c0 = arith.constant 0 : index
    %c0_0 = arith.constant 0 : index
    %0 = vector.load %arg1[%c0, %c0_0] : memref<8x32xf32, #tpu.memory_space<vmem>>, vector<8x32xf32>
    %c0_1 = arith.constant 0 : index
    %c0_2 = arith.constant 0 : index
    %1 = vector.load %arg2[%c0_1, %c0_2] : memref<8x32xf32, #tpu.memory_space<vmem>>, vector<8x32xf32>
    %c0_3 = arith.constant 0 : index
    %c0_4 = arith.constant 0 : index
    %2 = vector.load %arg3[%c0_3, %c0_4] : memref<8x32xf32, #tpu.memory_space<vmem>>, vector<8x32xf32>
    %3 = arith.subf %0, %2 : vector<8x32xf32>
    %cst = arith.constant 9.99999997E-7 : f32
    %4 = vector.broadcast %cst : f32 to vector<8x32xf32>
    %5 = arith.addf %3, %4 : vector<8x32xf32>
    %6 = arith.subf %0, %1 : vector<8x32xf32>
    %cst_5 = arith.constant 9.99999997E-7 : f32
    %7 = vector.broadcast %cst_5 : f32 to vector<8x32xf32>
    %8 = arith.addf %6, %7 : vector<8x32xf32>
    %9 = arith.mulf %5, %5 : vector<8x32xf32>
    %cst_6 = arith.constant dense<0.000000e+00> : vector<8xf32>
    %10 = vector.multi_reduction <add>, %9, %cst_6 [1] : vector<8x32xf32> to vector<8xf32>
    %11 = vector.shape_cast %10 : vector<8xf32> to vector<8x1xf32>
    %12 = math.sqrt %11 : vector<8x1xf32>
    %13 = arith.mulf %8, %8 : vector<8x32xf32>
    %cst_7 = arith.constant dense<0.000000e+00> : vector<8xf32>
    %14 = vector.multi_reduction <add>, %13, %cst_7 [1] : vector<8x32xf32> to vector<8xf32>
    %15 = vector.shape_cast %14 : vector<8xf32> to vector<8x1xf32>
    %16 = math.sqrt %15 : vector<8x1xf32>
    %17 = arith.subf %12, %16 : vector<8x1xf32>
    %cst_8 = arith.constant 5.000000e-01 : f32
    %18 = vector.broadcast %cst_8 : f32 to vector<8x1xf32>
    %19 = arith.addf %17, %18 : vector<8x1xf32>
    %cst_9 = arith.constant 0.000000e+00 : f32
    %20 = vector.broadcast %cst_9 : f32 to vector<8x1xf32>
    %21 = arith.maximumf %19, %20 : vector<8x1xf32>
    %c8_i32 = arith.constant 8 : i32
    %22 = arith.muli %arg0, %c8_i32 : i32
    %23 = tpu.iota {dimensions = array<i32: 0>} : vector<8x1xi32>
    %24 = vector.broadcast %22 : i32 to vector<8x1xi32>
    %25 = arith.addi %24, %23 : vector<8x1xi32>
    %c8_i32_10 = arith.constant 8 : i32
    %26 = vector.broadcast %c8_i32_10 : i32 to vector<8x1xi32>
    %27 = arith.cmpi slt, %25, %26 : vector<8x1xi32>
    %cst_11 = arith.constant 0.000000e+00 : f32
    %28 = vector.broadcast %cst_11 : f32 to vector<8x1xf32>
    %29 = arith.select %27, %21, %28 : vector<8x1xi1>, vector<8x1xf32>
    %c0_12 = arith.constant 0 : index
    %c0_13 = arith.constant 0 : index
    %30 = vector.load %arg4[%c0_12, %c0_13] : memref<8x1xf32, #tpu.memory_space<vmem>>, vector<8x1xf32>
    tpu.vector_store %arg4[%c0_12, %c0_13], %29 {strides = array<i32>} : memref<8x1xf32, #tpu.memory_space<vmem>>, vector<8x1xf32>,
    return
  }
  func.func @transform_0(%arg0: i32) -> (i32, i32) {
    %c0_i32 = arith.constant 0 : i32
    %c0_i32_0 = arith.constant 0 : i32
    return %arg0, %c0_i32 : i32, i32
  }
  func.func @transform_1(%arg0: i32) -> (i32, i32) {
    %c0_i32 = arith.constant 0 : i32
    %c0_i32_0 = arith.constant 0 : i32
    return %arg0, %c0_i32 : i32, i32
  }
  func.func @transform_2(%arg0: i32) -> (i32, i32) {
    %c0_i32 = arith.constant 0 : i32
    %c0_i32_0 = arith.constant 0 : i32
    return %arg0, %c0_i32 : i32, i32
  }
  func.func @transform_3(%arg0: i32) -> (i32, i32) {
    %c0_i32 = arith.constant 0 : i32
    %c0_i32_0 = arith.constant 0 : i32
    return %arg0, %c0_i32 : i32, i32
  }
}

</mosaic_0001>

<llo_original>
// kernel: tpu_custom_call.1
$region0: #{tpu_custom_call.1}
  #allocation0 [shape = 'u32[]', space=smem, size = 0x4, offset = 0x4, fixed_abs, tag = 'smem constant byte address 0x4 - core index']
  #allocation1 [shape = 'u32[144,128]{1,0:T(1,128)}', space=vmem, size = 0x12000, scoped, tag = 'internal scratch']
  %s0 = inlined_call_operand.hbm [shape: f32[8,32], index: 0, kind: input, shape index: {}]
  %s1 = inlined_call_operand.hbm [shape: f32[8,32], index: 1, kind: input, shape index: {}]
  %s2 = inlined_call_operand.hbm [shape: f32[8,32], index: 2, kind: input, shape index: {}]
  %s3 = inlined_call_operand.vmem [shape: f32[8,1], index: 3, kind: output, shape index: {}]
  %s4 = sld [smem:[#allocation0]]
  $region34: #{tpu_custom_call.1} parent=0
    _
  %s6 = ssub.s32 1, %s4
  %s7 = scalar_select 0, %s6, %s4
  $region1: #{tpu_custom_call.1} parent=0
    #allocation2 [shape = 'u8[4096]{0}', space=vmem, size = 0x1000, scoped, tag = 'input window, operand 0, single buffered']
    #allocation3 [shape = 's32[1]{0}', space=sflag, size = 0x4, scoped, tag = 'scoped memory for tpu_custom_call.1']
    #allocation4 [shape = 'u8[4096]{0}', space=vmem, size = 0x1000, scoped, tag = 'input window, operand 1, single buffered']
    #allocation5 [shape = 's32[1]{0}', space=sflag, size = 0x4, scoped, tag = 'scoped memory for tpu_custom_call.1']
    #allocation6 [shape = 'u8[4096]{0}', space=vmem, size = 0x1000, scoped, tag = 'input window, operand 2, single buffered']
    %8 = vsyncpa [#allocation3], 0
    %9 = vsyncpa [#allocation5], 0
    // Predicated region
    $region2: #{tpu_custom_call.1} parent=1 // pred_check
      _
    $region3: #{tpu_custom_call.1} parent=1 // pred_check_branch
      %11 = sbr.rel (0) target = $region5
    $region4: #{tpu_custom_call.1} parent=1 // pred_region
      %s13 = ssub.s32 128, 128
      %14 = vsyncadd [#allocation3], %s13
      %s16 = sshll.u32 [#allocation2], 4
      %s17 = int_to_ptr.vmem [resolvable:$true] %s16
      %19 = dma.hbm_to_vmem [thread:$0]  %s0, 128, %s17, [#allocation3]
    $region5: #{tpu_custom_call.1} parent=1 // pred_fallthru
      _
    // Predicated region
    $region6: #{tpu_custom_call.1} parent=1 // pred_check
      _
    $region7: #{tpu_custom_call.1} parent=1 // pred_check_branch
      %21 = sbr.rel (0) target = $region9
    $region8: #{tpu_custom_call.1} parent=1 // pred_region
      %s23 = ssub.s32 128, 128
      %24 = vsyncadd [#allocation5], %s23
      %s26 = sshll.u32 [#allocation4], 4
      %s27 = int_to_ptr.vmem [resolvable:$true] %s26
      %29 = dma.hbm_to_vmem [thread:$0]  %s1, 128, %s27, [#allocation5]
    $region9: #{tpu_custom_call.1} parent=1 // pred_fallthru
      _
    // Predicated region
    $region10: #{tpu_custom_call.1} parent=1 // pred_check
      _
    $region11: #{tpu_custom_call.1} parent=1 // pred_check_branch
      %31 = sbr.rel (0) target = $region13
    $region12: #{tpu_custom_call.1} parent=1 // pred_region
      %s33 = ssub.s32 128, 128
      %34 = vsyncadd [#allocation5], %s33
      %s36 = sshll.u32 [#allocation6], 4
      %s37 = int_to_ptr.vmem [resolvable:$true] %s36
      %39 = dma.hbm_to_vmem [thread:$0]  %s2, 128, %s37, [#allocation5]
    $region13: #{tpu_custom_call.1} parent=1 // pred_fallthru
      _
    // Predicated region
    $region14: #{tpu_custom_call.1} parent=1 // pred_check
      _
    $region15: #{tpu_custom_call.1} parent=1 // pred_check_branch
      %41 = sbr.rel (0) target = $region17
    $region16: #{tpu_custom_call.1} parent=1 // pred_region
      %42 = dma.done [#allocation3], 128
    $region17: #{tpu_custom_call.1} parent=1 // pred_fallthru
      _
    // Predicated region
    $region18: #{tpu_custom_call.1} parent=1 // pred_check
      _
    $region19: #{tpu_custom_call.1} parent=1 // pred_check_branch
      %44 = sbr.rel (0) target = $region21
    $region20: #{tpu_custom_call.1} parent=1 // pred_region
      %45 = dma.done [#allocation5], 128
    $region21: #{tpu_custom_call.1} parent=1 // pred_fallthru
      _
    // Predicated region
    $region22: #{tpu_custom_call.1} parent=1 // pred_check
      _
    $region23: #{tpu_custom_call.1} parent=1 // pred_check_branch
      %47 = sbr.rel (0) target = $region25
    $region24: #{tpu_custom_call.1} parent=1 // pred_region
      %48 = dma.done [#allocation5], 128
    $region25: #{tpu_custom_call.1} parent=1 // pred_fallthru
      _
    %v49 = vld [vmem:[#allocation2] sm:$0xff]
    %v50 = vld [vmem:[#allocation4] sm:$0xff]
    %v51 = vld [vmem:[#allocation6] sm:$0xff]
    %v52 = vsub.f32 %v49, %v51
    %v53 = vadd.f32 %v52, 1e-06
    %v54 = vsub.f32 %v49, %v50
    %v55 = vadd.f32 %v54, 1e-06
    %v56 = vmul.f32 %v53, %v53
    %vm57 = vcmask 261120
    %v58 = vsel %vm57, %v56, 0.0
    %59 = vadd.xlane.f32.xlu0 %v58
    %v60 = vpop.xlane.xlu0 %59
    %v61 = vrsqrt.pop %v60
    %v62 = vmul.f32 %v60, %v61
    %vm63 = vcmp.eq.f32.partialorder %v60, inf
    %v64 = vsel %vm63, %v60, %v62
    %vm65 = vcmp.eq.f32.partialorder %v60, 0.0
    %v66 = vand.u32 %v60, 2147483648
    %v67 = vsel %vm65, %v66, %v64
    %v68 = vmul.f32 %v55, %v55
    %v69 = vsel %vm57, %v68, 0.0
    %70 = vadd.xlane.f32.xlu0 %v69
    %v71 = vpop.xlane.xlu0 %70
    %v72 = vrsqrt.pop %v71
    %v73 = vmul.f32 %v71, %v72
    %vm74 = vcmp.eq.f32.partialorder %v71, inf
    %v75 = vsel %vm74, %v71, %v73
    %vm76 = vcmp.eq.f32.partialorder %v71, 0.0
    %v77 = vand.u32 %v71, 2147483648
    %v78 = vsel %vm76, %v77, %v75
    %v79 = vsub.f32 %v67, %v78
    %v80 = vadd.f32 %v79, 0.5
    %v81 = vmax.f32 %v80, 0.0
    %s82 = smul.u32 0, 8
    %v83 = vlaneseq
    %v84 = vshrl.u32 %v83, 7
    %v85 = vstv %s82
    %v86 = vadd.s32 %v85, %v84
    %vm87 = vcmp.lt.s32.totalorder %v86, 8
    %v88 = vsel %vm87, %v81, 0.0
    %vm89 = vcmask 7168
    %90 = vst.msk [vmem:[%s3] sm:$0xff] %vm89, %v88
    // Predicated region
    $region26: #{tpu_custom_call.1} parent=1 // pred_check
      _
    $region27: #{tpu_custom_call.1} parent=1 // pred_check_branch
      %92 = sbr.rel (0) target = $region29
    $region28: #{tpu_custom_call.1} parent=1 // pred_region
      _
    $region29: #{tpu_custom_call.1} parent=1 // pred_fallthru
      _
    // Predicated region
    $region30: #{tpu_custom_call.1} parent=1 // pred_check
      _
    $region31: #{tpu_custom_call.1} parent=1 // pred_check_branch
      %94 = sbr.rel (0) target = $region33
    $region32: #{tpu_custom_call.1} parent=1 // pred_region
      _
    $region33: #{tpu_custom_call.1} parent=1 // pred_fallthru
      _
    %95 = vsyncpa [#allocation3], 1
    %96 = vsyncpa [#allocation5], 1

</llo_original>
